<compile_context>
chip_gen: v7x
topology: tpu7x:2x2x1
jax: 0.10.0
libtpu: 0.0.40
codegen_flags: <defaults>
</compile_context>

<pallas_src>
import functools

import jax
import jax.numpy as jnp
from jax.experimental import pallas as pl
from jax.experimental.pallas import tpu as pltpu


def _dice_kernel(pred_ref, gt_ref, mask_ref, a_out_ref, bc_out_ref,
                 a_acc, bc_acc):
    k = pl.program_id(1)

    @pl.when(k == 0)
    def _():
        a_acc[...] = jnp.zeros_like(a_acc)
        bc_acc[...] = jnp.zeros_like(bc_acc)

    # Hot path: pure element-wise VPU work on full (tile_rows, 128) vregs.
    m = mask_ref[...].astype(jnp.float32)
    p = pred_ref[...].astype(jnp.float32) * m
    g = gt_ref[...].astype(jnp.float32) * m
    a_acc[...] += p * g
    bc_acc[...] += p * p + g * g

    @pl.when(k == pl.num_programs(1) - 1)
    def _():
        # One cross-sublane reduction per accumulator per parallel slice:
        # (B, tile_rows, 128) -> (B, 128) lane partials.
        a_out_ref[0] = jnp.sum(a_acc[...], axis=1)
        bc_out_ref[0] = jnp.sum(bc_acc[...], axis=1)


def _choose_row_tiling(rows, max_rows):
    """Pick tile_rows dividing the (possibly padded) row count.

    tile_rows must be a multiple of 8 or equal the full row extent.
    Returns (tile_rows, rows_padded)."""
    max_rows = max(8, max_rows - (max_rows % 8))
    if rows <= max_rows:
        return rows, rows                      # single full-extent row tile
    t = max_rows
    while t >= 8:
        if rows % t == 0:
            return t, rows                     # exact divisor -> no padding
        t -= 8
    # No multiple-of-8 divisor (rare, awkward shapes): pad rows with zeros.
    t = max_rows
    return t, pl.cdiv(rows, t) * t


@functools.partial(jax.jit, static_argnames=("block_rows",))
def dice_loss(pred, gt, masks, *, block_rows=None):
    b = pred.shape[0]
    lanes = 128

    # Match torch broadcasting semantics (no-op if shapes already match).
    gt = jnp.broadcast_to(gt, pred.shape)
    masks = jnp.broadcast_to(masks, pred.shape)

    n = pred.size // b
    pred2 = pred.reshape(b, n)
    gt2 = gt.reshape(b, n)
    masks2 = masks.reshape(b, n)

    # Lane-dense view; (B, N) -> (B, R, 128) is a free row-major reshape.
    if n % lanes != 0:
        # Zero padding contributes nothing to any of the three sums.
        pad = lanes - n % lanes
        pred2 = jnp.pad(pred2, ((0, 0), (0, pad)))
        gt2 = jnp.pad(gt2, ((0, 0), (0, pad)))
        masks2 = jnp.pad(masks2, ((0, 0), (0, pad)))
        n += pad
    rows = n // lanes

    if block_rows is None:
        # ~1 MiB of f32 pred per input tile per grid step.
        block_rows = max(8, (1 << 20) // (b * lanes * 4))
    tile_rows, rows_pad = _choose_row_tiling(rows, block_rows)

    pred3 = pred2.reshape(b, rows, lanes)
    gt3 = gt2.reshape(b, rows, lanes)
    masks3 = masks2.reshape(b, rows, lanes)
    if rows_pad != rows:
        rpad = ((0, 0), (0, rows_pad - rows), (0, 0))
        pred3 = jnp.pad(pred3, rpad)
        gt3 = jnp.pad(gt3, rpad)
        masks3 = jnp.pad(masks3, rpad)

    num_tiles = rows_pad // tile_rows
    n_par = 2 if num_tiles % 2 == 0 else 1     # feed both v7x TensorCores
    n_red = num_tiles // n_par

    in_spec = pl.BlockSpec((b, tile_rows, lanes),
                           lambda p, k: (0, p * n_red + k, 0))
    out_spec = pl.BlockSpec((1, b, lanes), lambda p, k: (p, 0, 0))
    part_shape = jax.ShapeDtypeStruct((n_par, b, lanes), jnp.float32)

    # Explicit VMEM budget: double-buffered inputs + 2 f32 accumulators,
    # capped well under v7x's 64 MiB physical VMEM (v5e/v6e have 128 MiB).
    tile_elems = b * tile_rows * lanes
    vmem_need = (
        2 * tile_elems * (pred3.dtype.itemsize + gt3.dtype.itemsize
                          + masks3.dtype.itemsize)
        + 2 * tile_elems * 4
        + 4 * n_par * b * lanes * 4)
    vmem_limit = int(min(vmem_need + (8 << 20), 56 * 1024 * 1024))

    a_part, bc_part = pl.pallas_call(
        _dice_kernel,
        out_shape=(part_shape, part_shape),
        grid_spec=pltpu.PrefetchScalarGridSpec(
            num_scalar_prefetch=0,
            grid=(n_par, n_red),
            in_specs=[in_spec, in_spec, in_spec],
            out_specs=(out_spec, out_spec),
            scratch_shapes=[
                pltpu.VMEM((b, tile_rows, lanes), jnp.float32),
                pltpu.VMEM((b, tile_rows, lanes), jnp.float32),
            ],
        ),
        compiler_params=pltpu.CompilerParams(
            dimension_semantics=("parallel", "arbitrary"),
            vmem_limit_bytes=vmem_limit,
        ),
    )(pred3, gt3, masks3)

    # Tiny XLA epilogue: combine per-half lane partials, form the dice loss.
    a = jnp.sum(a_part, axis=(0, 2))           # (B,)  sum(p*g)
    bc = jnp.sum(bc_part, axis=(0, 2))         # (B,)  sum(p*p) + sum(g*g)
    d = 2.0 * a / (bc + 1e-6)
    return jnp.mean(1.0 - d)


def _dice_loss_ref(pred, gt, masks):
    b = pred.shape[0]
    m = jnp.broadcast_to(masks, pred.shape).astype(jnp.float32)
    p = (pred.astype(jnp.float32) * m).reshape(b, -1)
    g = (jnp.broadcast_to(gt, pred.shape).astype(jnp.float32) * m).reshape(b, -1)
    a = jnp.sum(p * g, axis=1)
    bb = jnp.sum(p * p, axis=1)
    c = jnp.sum(g * g, axis=1)
    d = 2.0 * a / (bb + c + 1e-6)
    return jnp.mean(1.0 - d)


if __name__ == "__main__":
    key = jax.random.PRNGKey(0)
    k1, k2, k3 = jax.random.split(key, 3)
    B, C, H, W = 2, 4, 16, 16  # NCHW, as in the PyTorch module

    pred = jax.nn.sigmoid(jax.random.normal(k1, (B, C, H, W), jnp.float32))
    # Binary gt / masks are exact in bf16 -> stream narrow, accumulate in f32.
    gt = (jax.random.uniform(k2, (B, C, H, W)) > 0.5).astype(jnp.bfloat16)
    masks = (jax.random.uniform(k3, (B, C, H, W)) > 0.2).astype(jnp.bfloat16)

    loss = dice_loss(pred, gt, masks)
    jax.block_until_ready(loss)

    ref = _dice_loss_ref(pred, gt, masks)
    assert jnp.allclose(loss, ref, rtol=1e-5, atol=1e-5), (loss, ref)
    print("KERNEL_OK")
</pallas_src>

<mosaic_0001>
module attributes {stable_mosaic.version = 11 : i64} {
  func.func @_dice_kernel(%arg0: i32, %arg1: i32, %arg2: memref<2x8x128xf32, #tpu.memory_space<vmem>>, %arg3: memref<2x8x128xbf16, #tpu.memory_space<vmem>>, %arg4: memref<2x8x128xbf16, #tpu.memory_space<vmem>>, %arg5: memref<1x2x128xf32, #tpu.memory_space<vmem>>, %arg6: memref<1x2x128xf32, #tpu.memory_space<vmem>>, %arg7: memref<2x8x128xf32, #tpu.memory_space<vmem>>, %arg8: memref<2x8x128xf32, #tpu.memory_space<vmem>>) attributes {dimension_semantics = [#tpu.dimension_semantics<parallel>, #tpu.dimension_semantics<arbitrary>], iteration_bounds = array<i64: 1, 1>, scalar_prefetch = 0 : i64, scratch_operands = 2 : i64, tpu.core_type = #tpu.core_type<tc>, window_params = [{transform_indices = @transform_0, window_bounds = array<i64: 2, 8, 128>}, {transform_indices = @transform_1, window_bounds = array<i64: 2, 8, 128>}, {transform_indices = @transform_2, window_bounds = array<i64: 2, 8, 128>}, {transform_indices = @transform_3, window_bounds = array<i64: 1, 2, 128>}, {transform_indices = @transform_4, window_bounds = array<i64: 1, 2, 128>}]} {
    %c0_i32 = arith.constant 0 : i32
    %0 = arith.cmpi eq, %arg1, %c0_i32 : i32
    %1 = arith.extui %0 : i1 to i32
    %c0_i32_0 = arith.constant 0 : i32
    %2 = arith.cmpi ne, %1, %c0_i32_0 : i32
    scf.if %2 {
      %cst = arith.constant 0.000000e+00 : f32
      %23 = vector.broadcast %cst : f32 to vector<2x8x128xf32>
      %c0_23 = arith.constant 0 : index
      %c0_24 = arith.constant 0 : index
      %c0_25 = arith.constant 0 : index
      %24 = vector.load %arg7[%c0_23, %c0_24, %c0_25] : memref<2x8x128xf32, #tpu.memory_space<vmem>>, vector<2x8x128xf32>
      tpu.vector_store %arg7[%c0_23, %c0_24, %c0_25], %23 {strides = array<i32>} : memref<2x8x128xf32, #tpu.memory_space<vmem>>, vector<2x8x128xf32>,
      %cst_26 = arith.constant 0.000000e+00 : f32
      %25 = vector.broadcast %cst_26 : f32 to vector<2x8x128xf32>
      %c0_27 = arith.constant 0 : index
      %c0_28 = arith.constant 0 : index
      %c0_29 = arith.constant 0 : index
      %26 = vector.load %arg8[%c0_27, %c0_28, %c0_29] : memref<2x8x128xf32, #tpu.memory_space<vmem>>, vector<2x8x128xf32>
      tpu.vector_store %arg8[%c0_27, %c0_28, %c0_29], %25 {strides = array<i32>} : memref<2x8x128xf32, #tpu.memory_space<vmem>>, vector<2x8x128xf32>,
    } else {
    }
    %c0 = arith.constant 0 : index
    %c0_1 = arith.constant 0 : index
    %c0_2 = arith.constant 0 : index
    %3 = vector.load %arg4[%c0, %c0_1, %c0_2] : memref<2x8x128xbf16, #tpu.memory_space<vmem>>, vector<2x8x128xbf16>
    %4 = arith.extf %3 : vector<2x8x128xbf16> to vector<2x8x128xf32>
    %c0_3 = arith.constant 0 : index
    %c0_4 = arith.constant 0 : index
    %c0_5 = arith.constant 0 : index
    %5 = vector.load %arg2[%c0_3, %c0_4, %c0_5] : memref<2x8x128xf32, #tpu.memory_space<vmem>>, vector<2x8x128xf32>
    %6 = arith.mulf %5, %4 : vector<2x8x128xf32>
    %c0_6 = arith.constant 0 : index
    %c0_7 = arith.constant 0 : index
    %c0_8 = arith.constant 0 : index
    %7 = vector.load %arg3[%c0_6, %c0_7, %c0_8] : memref<2x8x128xbf16, #tpu.memory_space<vmem>>, vector<2x8x128xbf16>
    %8 = arith.extf %7 : vector<2x8x128xbf16> to vector<2x8x128xf32>
    %9 = arith.mulf %8, %4 : vector<2x8x128xf32>
    %c0_9 = arith.constant 0 : index
    %c0_10 = arith.constant 0 : index
    %c0_11 = arith.constant 0 : index
    %10 = vector.load %arg7[%c0_9, %c0_10, %c0_11] : memref<2x8x128xf32, #tpu.memory_space<vmem>>, vector<2x8x128xf32>
    %11 = arith.mulf %6, %9 : vector<2x8x128xf32>
    %12 = arith.addf %10, %11 : vector<2x8x128xf32>
    %c0_12 = arith.constant 0 : index
    %c0_13 = arith.constant 0 : index
    %c0_14 = arith.constant 0 : index
    %13 = vector.load %arg7[%c0_12, %c0_13, %c0_14] : memref<2x8x128xf32, #tpu.memory_space<vmem>>, vector<2x8x128xf32>
    tpu.vector_store %arg7[%c0_12, %c0_13, %c0_14], %12 {strides = array<i32>} : memref<2x8x128xf32, #tpu.memory_space<vmem>>, vector<2x8x128xf32>,
    %c0_15 = arith.constant 0 : index
    %c0_16 = arith.constant 0 : index
    %c0_17 = arith.constant 0 : index
    %14 = vector.load %arg8[%c0_15, %c0_16, %c0_17] : memref<2x8x128xf32, #tpu.memory_space<vmem>>, vector<2x8x128xf32>
    %15 = arith.mulf %6, %6 : vector<2x8x128xf32>
    %16 = arith.mulf %9, %9 : vector<2x8x128xf32>
    %17 = arith.addf %15, %16 : vector<2x8x128xf32>
    %18 = arith.addf %14, %17 : vector<2x8x128xf32>
    %c0_18 = arith.constant 0 : index
    %c0_19 = arith.constant 0 : index
    %c0_20 = arith.constant 0 : index
    %19 = vector.load %arg8[%c0_18, %c0_19, %c0_20] : memref<2x8x128xf32, #tpu.memory_space<vmem>>, vector<2x8x128xf32>
    tpu.vector_store %arg8[%c0_18, %c0_19, %c0_20], %18 {strides = array<i32>} : memref<2x8x128xf32, #tpu.memory_space<vmem>>, vector<2x8x128xf32>,
    %c0_i32_21 = arith.constant 0 : i32
    %20 = arith.cmpi eq, %arg1, %c0_i32_21 : i32
    %21 = arith.extui %20 : i1 to i32
    %c0_i32_22 = arith.constant 0 : i32
    %22 = arith.cmpi ne, %21, %c0_i32_22 : i32
    scf.if %22 {
      %c0_23 = arith.constant 0 : index
      %c0_24 = arith.constant 0 : index
      %c0_25 = arith.constant 0 : index
      %23 = vector.load %arg7[%c0_23, %c0_24, %c0_25] : memref<2x8x128xf32, #tpu.memory_space<vmem>>, vector<2x8x128xf32>
      %cst = arith.constant dense<0.000000e+00> : vector<2x128xf32>
      %24 = vector.multi_reduction <add>, %23, %cst [1] : vector<2x8x128xf32> to vector<2x128xf32>
      %c0_26 = arith.constant 0 : index
      %c0_27 = arith.constant 0 : index
      %c0_28 = arith.constant 0 : index
      %25 = vector.load %arg5[%c0_26, %c0_27, %c0_28] : memref<1x2x128xf32, #tpu.memory_space<vmem>>, vector<1x2x128xf32>
      %26 = vector.shape_cast %25 : vector<1x2x128xf32> to vector<2x128xf32>
      %27 = vector.shape_cast %24 : vector<2x128xf32> to vector<1x2x128xf32>
      tpu.vector_store %arg5[%c0_26, %c0_27, %c0_28], %27 {strides = array<i32>} : memref<1x2x128xf32, #tpu.memory_space<vmem>>, vector<1x2x128xf32>,
      %c0_29 = arith.constant 0 : index
      %c0_30 = arith.constant 0 : index
      %c0_31 = arith.constant 0 : index
      %28 = vector.load %arg8[%c0_29, %c0_30, %c0_31] : memref<2x8x128xf32, #tpu.memory_space<vmem>>, vector<2x8x128xf32>
      %cst_32 = arith.constant dense<0.000000e+00> : vector<2x128xf32>
      %29 = vector.multi_reduction <add>, %28, %cst_32 [1] : vector<2x8x128xf32> to vector<2x128xf32>
      %c0_33 = arith.constant 0 : index
      %c0_34 = arith.constant 0 : index
      %c0_35 = arith.constant 0 : index
      %30 = vector.load %arg6[%c0_33, %c0_34, %c0_35] : memref<1x2x128xf32, #tpu.memory_space<vmem>>, vector<1x2x128xf32>
      %31 = vector.shape_cast %30 : vector<1x2x128xf32> to vector<2x128xf32>
      %32 = vector.shape_cast %29 : vector<2x128xf32> to vector<1x2x128xf32>
      tpu.vector_store %arg6[%c0_33, %c0_34, %c0_35], %32 {strides = array<i32>} : memref<1x2x128xf32, #tpu.memory_space<vmem>>, vector<1x2x128xf32>,
    } else {
    }
    return
  }
  func.func @transform_0(%arg0: i32, %arg1: i32) -> (i32, i32, i32) {
    %c1_i32 = arith.constant 1 : i32
    %0 = arith.muli %arg0, %c1_i32 : i32
    %1 = arith.addi %0, %arg1 : i32
    %c0_i32 = arith.constant 0 : i32
    %c0_i32_0 = arith.constant 0 : i32
    %c0_i32_1 = arith.constant 0 : i32
    return %c0_i32, %1, %c0_i32_0 : i32, i32, i32
  }
  func.func @transform_1(%arg0: i32, %arg1: i32) -> (i32, i32, i32) {
    %c1_i32 = arith.constant 1 : i32
    %0 = arith.muli %arg0, %c1_i32 : i32
    %1 = arith.addi %0, %arg1 : i32
    %c0_i32 = arith.constant 0 : i32
    %c0_i32_0 = arith.constant 0 : i32
    %c0_i32_1 = arith.constant 0 : i32
    return %c0_i32, %1, %c0_i32_0 : i32, i32, i32
  }
  func.func @transform_2(%arg0: i32, %arg1: i32) -> (i32, i32, i32) {
    %c1_i32 = arith.constant 1 : i32
    %0 = arith.muli %arg0, %c1_i32 : i32
    %1 = arith.addi %0, %arg1 : i32
    %c0_i32 = arith.constant 0 : i32
    %c0_i32_0 = arith.constant 0 : i32
    %c0_i32_1 = arith.constant 0 : i32
    return %c0_i32, %1, %c0_i32_0 : i32, i32, i32
  }
  func.func @transform_3(%arg0: i32, %arg1: i32) -> (i32, i32, i32) {
    %c0_i32 = arith.constant 0 : i32
    %c0_i32_0 = arith.constant 0 : i32
    %c0_i32_1 = arith.constant 0 : i32
    return %arg0, %c0_i32, %c0_i32_0 : i32, i32, i32
  }
  func.func @transform_4(%arg0: i32, %arg1: i32) -> (i32, i32, i32) {
    %c0_i32 = arith.constant 0 : i32
    %c0_i32_0 = arith.constant 0 : i32
    %c0_i32_1 = arith.constant 0 : i32
    return %arg0, %c0_i32, %c0_i32_0 : i32, i32, i32
  }
}

</mosaic_0001>

<llo_original>
// kernel: dice_loss.1
$region0: #{dice_loss.1}
  #allocation0 [shape = 'u32[]', space=smem, size = 0x4, offset = 0x4, fixed_abs, tag = 'smem constant byte address 0x4 - core index']
  #allocation1 [shape = 'u32[144,128]{1,0:T(1,128)}', space=vmem, size = 0x12000, scoped, tag = 'internal scratch']
  #allocation2 [shape = 'f32[2,8,128]{2,1,0:T(8,128)}', space=vmem, size = 0x2000, scoped, tag = 'scratch operand']
  #allocation3 [shape = 'f32[2,8,128]{2,1,0:T(8,128)}', space=vmem, size = 0x2000, scoped, tag = 'scratch operand']
  %s0 = inlined_call_operand.vmem [shape: f32[2,8,128], index: 0, kind: input, shape index: {}]
  %s1 = inlined_call_operand.vmem [shape: bf16[2,8,128], index: 1, kind: input, shape index: {}]
  %s2 = inlined_call_operand.vmem [shape: bf16[2,8,128], index: 2, kind: input, shape index: {}]
  %s3 = inlined_call_operand.vmem [shape: f32[1,2,128], index: 3, kind: output, shape index: {0}]
  %s4 = inlined_call_operand.vmem [shape: f32[1,2,128], index: 4, kind: output, shape index: {1}]
  %5 = xla_tuple %s3, %s4
  %s6 = sld [smem:[#allocation0]]
  $region38: #{dice_loss.1} parent=0
    _
  %s8 = ssub.s32 1, %s6
  %s9 = scalar_select 0, %s8, %s6
  // Predicated region
  $region2: #{dice_loss.1} parent=0 // pred_check
    _
  $region3: #{dice_loss.1} parent=0 // pred_check_branch
    %11 = sbr.rel (0) target = $region5
  $region4: #{dice_loss.1} parent=0 // pred_region
    %s12 = sadd.s32 0, 0
    %p13 = scmp.lt.s32.totalorder %s12, 0
    %s14 = scalar_select %p13, %s12, 0
    %s15 = smul.addr %s14, 8
    %s16 = scalar_lea.vmem %s0, %s15
    %s17 = sadd.s32 0, 0
  $region5: #{dice_loss.1} parent=0 // pred_fallthru
    _
  // Predicated region
  $region6: #{dice_loss.1} parent=0 // pred_check
    _
  $region7: #{dice_loss.1} parent=0 // pred_check_branch
    %19 = sbr.rel (0) target = $region9
  $region8: #{dice_loss.1} parent=0 // pred_region
    %s20 = sadd.s32 0, 0
    %p21 = scmp.lt.s32.totalorder %s20, 0
    %s22 = scalar_select %p21, %s20, 0
    %s23 = smul.addr %s22, 4
    %s24 = scalar_lea.vmem %s1, %s23
    %s25 = sadd.s32 0, 0
  $region9: #{dice_loss.1} parent=0 // pred_fallthru
    _
  // Predicated region
  $region10: #{dice_loss.1} parent=0 // pred_check
    _
  $region11: #{dice_loss.1} parent=0 // pred_check_branch
    %27 = sbr.rel (0) target = $region13
  $region12: #{dice_loss.1} parent=0 // pred_region
    %s28 = sadd.s32 0, 0
    %p29 = scmp.lt.s32.totalorder %s28, 0
    %s30 = scalar_select %p29, %s28, 0
    %s31 = smul.addr %s30, 4
    %s32 = scalar_lea.vmem %s2, %s31
    %s33 = sadd.s32 0, 0
  $region13: #{dice_loss.1} parent=0 // pred_fallthru
    _
  %s34 = sadd.s32 0, 0
  %p35 = scmp.lt.s32.totalorder %s34, 0
  %s36 = scalar_select %p35, %s34, 0
  %s37 = smul.addr %s36, 8
  %s38 = scalar_lea.vmem %s0, %s37
  %s39 = sadd.s32 0, 0
  %p40 = scmp.lt.s32.totalorder %s39, 0
  %s41 = scalar_select %p40, %s39, 0
  %s42 = smul.addr %s41, 4
  %s43 = scalar_lea.vmem %s1, %s42
  %s44 = sadd.s32 0, 0
  %p45 = scmp.lt.s32.totalorder %s44, 0
  %s46 = scalar_select %p45, %s44, 0
  %s47 = smul.addr %s46, 4
  %s48 = scalar_lea.vmem %s2, %s47
  %s49 = sadd.s32 0, 0
  %p50 = scmp.lt.s32.totalorder %s49, 0
  %s51 = scalar_select %p50, %s49, 0
  %s52 = smul.addr %s51, 8
  %s53 = scalar_lea.vmem %s0, %s52
  %s54 = sadd.s32 0, 0
  %s55 = sadd.s32 0, 0
  %p56 = scmp.lt.s32.totalorder %s55, 0
  %s57 = scalar_select %p56, %s55, 0
  %s58 = smul.addr %s57, 4
  %s59 = scalar_lea.vmem %s1, %s58
  %s60 = sadd.s32 0, 0
  %s61 = sadd.s32 0, 0
  %p62 = scmp.lt.s32.totalorder %s61, 0
  %s63 = scalar_select %p62, %s61, 0
  %s64 = smul.addr %s63, 4
  %s65 = scalar_lea.vmem %s2, %s64
  %s66 = sadd.s32 0, 0
  %p67 = scmp.eq.s32.totalorder 0, 0
  // Predicated region
  $region14: #{dice_loss.1} parent=0 // pred_check
    %p68 = pneg %p67
  $region15: #{dice_loss.1} parent=0 // pred_check_branch
    %70 = sbr.rel (%p68) target = $region17
  $region16: #{dice_loss.1} parent=0 // pred_region
    %71 = vst [vmem:[#allocation2] sm:$0xff] 0.0
    %72 = vst [vmem:[#allocation2 + $0x8] sm:$0xff] 0.0
    %73 = vst [vmem:[#allocation3] sm:$0xff] 0.0
    %74 = vst [vmem:[#allocation3 + $0x8] sm:$0xff] 0.0
  $region17: #{dice_loss.1} parent=0 // pred_fallthru
    _
  %v75 = vld [vmem:[%s65] sm:$0xf]
  %v76 = vld [vmem:[%s65 + $0x4] sm:$0xf]
  %v77 = vunpack.c.l.bf16 %v75
  %v78 = vunpack.c.l.bf16 %v76
  %v79 = vld [vmem:[%s53] sm:$0xff]
  %v80 = vld [vmem:[%s53 + $0x8] sm:$0xff]
  %v81 = vmul.f32 %v79, %v77
  %v82 = vmul.f32 %v80, %v78
  %v83 = vld [vmem:[%s59] sm:$0xf]
  %v84 = vld [vmem:[%s59 + $0x4] sm:$0xf]
  %v85 = vunpack.c.l.bf16 %v83
  %v86 = vunpack.c.l.bf16 %v84
  %v87 = vmul.f32 %v85, %v77
  %v88 = vmul.f32 %v86, %v78
  %v89 = vld [vmem:[#allocation2] sm:$0xff]
  %v90 = vld [vmem:[#allocation2 + $0x8] sm:$0xff]
  %v91 = vmul.f32 %v81, %v87
  %v92 = vmul.f32 %v82, %v88
  %v93 = vadd.f32 %v89, %v91
  %v94 = vadd.f32 %v90, %v92
  %95 = vst [vmem:[#allocation2] sm:$0xff] %v93
  %96 = vst [vmem:[#allocation2 + $0x8] sm:$0xff] %v94
  %v97 = vld [vmem:[#allocation3] sm:$0xff]
  %v98 = vld [vmem:[#allocation3 + $0x8] sm:$0xff]
  %v99 = vmul.f32 %v81, %v81
  %v100 = vmul.f32 %v82, %v82
  %v101 = vmul.f32 %v87, %v87
  %v102 = vmul.f32 %v88, %v88
  %v103 = vadd.f32 %v99, %v101
  %v104 = vadd.f32 %v100, %v102
  %v105 = vadd.f32 %v97, %v103
  %v106 = vadd.f32 %v98, %v104
  %107 = vst [vmem:[#allocation3] sm:$0xff] %v105
  %108 = vst [vmem:[#allocation3 + $0x8] sm:$0xff] %v106
  // Predicated region
  $region18: #{dice_loss.1} parent=0 // pred_check
    %p109 = pneg %p67
  $region19: #{dice_loss.1} parent=0 // pred_check_branch
    %111 = sbr.rel (%p109) target = $region21
  $region20: #{dice_loss.1} parent=0 // pred_region
    %v112 = vld [vmem:[#allocation2] sm:$0xff]
    %v113 = vld [vmem:[#allocation2 + $0x8] sm:$0xff]
    %v114 = vrot.slane %v112, 4
    %v115 = vadd.f32 %v112, %v114
    %v116 = vrot.slane %v115, 2
    %v117 = vadd.f32 %v115, %v116
    %v118 = vrot.slane %v117, 1
    %v119 = vadd.f32 %v117, %v118
    %v120 = vrot.slane %v113, 4
    %v121 = vadd.f32 %v113, %v120
    %v122 = vrot.slane %v121, 2
    %v123 = vadd.f32 %v121, %v122
    %v124 = vrot.slane %v123, 1
    %v125 = vadd.f32 %v123, %v124
    %vm128 = vcmask 1041409
    %v129 = vsel %vm128, %v125, %v119
    %131 = vst [vmem:[%s3] sm:$0x3] %v129
    %v132 = vld [vmem:[#allocation3] sm:$0xff]
    %v133 = vld [vmem:[#allocation3 + $0x8] sm:$0xff]
    %v134 = vrot.slane %v132, 4
    %v135 = vadd.f32 %v132, %v134
    %v136 = vrot.slane %v135, 2
    %v137 = vadd.f32 %v135, %v136
    %v138 = vrot.slane %v137, 1
    %v139 = vadd.f32 %v137, %v138
    %v140 = vrot.slane %v133, 4
    %v141 = vadd.f32 %v133, %v140
    %v142 = vrot.slane %v141, 2
    %v143 = vadd.f32 %v141, %v142
    %v144 = vrot.slane %v143, 1
    %v145 = vadd.f32 %v143, %v144
    %v148 = vsel %vm128, %v145, %v139
    %150 = vst [vmem:[%s4] sm:$0x3] %v148
  $region21: #{dice_loss.1} parent=0 // pred_fallthru
    _
  // Predicated region
  $region22: #{dice_loss.1} parent=0 // pred_check
    _
  $region23: #{dice_loss.1} parent=0 // pred_check_branch
    %152 = sbr.rel (0) target = $region25
  $region24: #{dice_loss.1} parent=0 // pred_region
    _
  $region25: #{dice_loss.1} parent=0 // pred_fallthru
    _
  // Predicated region
  $region26: #{dice_loss.1} parent=0 // pred_check
    _
  $region27: #{dice_loss.1} parent=0 // pred_check_branch
    %154 = sbr.rel (0) target = $region29
  $region28: #{dice_loss.1} parent=0 // pred_region
    _
  $region29: #{dice_loss.1} parent=0 // pred_fallthru
    _
  // Predicated region
  $region30: #{dice_loss.1} parent=0 // pred_check
    _
  $region31: #{dice_loss.1} parent=0 // pred_check_branch
    %156 = sbr.rel (0) target = $region33
  $region32: #{dice_loss.1} parent=0 // pred_region
    _
  $region33: #{dice_loss.1} parent=0 // pred_fallthru
    _
  // Predicated region
  $region34: #{dice_loss.1} parent=0 // pred_check
    _
  $region35: #{dice_loss.1} parent=0 // pred_check_branch
    %158 = sbr.rel (0) target = $region37
  $region36: #{dice_loss.1} parent=0 // pred_region
    _
  $region37: #{dice_loss.1} parent=0 // pred_fallthru
    _

</llo_original>
